<compile_context>
chip_gen: v5e
topology: v5e:2x2
jax: 0.10.0
libtpu: 0.0.40
codegen_flags: <defaults>
</compile_context>

<pallas_src>
import jax
import jax.numpy as jnp
from jax.experimental import pallas as pl
from jax.experimental.pallas import tpu as pltpu


def _odef_kernel(w_ref, z_ref, o_ref):
    """w_ref: (2, 2) f32 in SMEM. z_ref/o_ref: (2, TN) f32 in VMEM (batch on lanes)."""
    z = z_ref[...]            # (2, TN)
    z0 = z[0:1, :]            # input feature 0, broadcast across the batch lanes
    z1 = z[1:2, :]            # input feature 1
    # out_row_j = sum_k W[j, k] * z_row_k   (== (z @ W.T).T in lane-dense layout)
    o_ref[0:1, :] = w_ref[0, 0] * z0 + w_ref[0, 1] * z1
    o_ref[1:2, :] = w_ref[1, 0] * z0 + w_ref[1, 1] * z1


def _round_up(x, m):
    return ((x + m - 1) // m) * m


def odef_forward(t, z, weight, *, max_lane_tile=8192):
    """Pallas equivalent of ODEF.forward(t, z).

    Args:
      t: scalar time (unused, kept for signature parity with the nn.Module).
      z: (N, 2) float32 state.
      weight: (2, 2) float32, PyTorch Linear convention (out_features, in_features).

    Returns:
      (N, 2) float32, equal to z @ weight.T
    """
    del t  # unused by ODEF.forward
    n, f_in = z.shape
    f_out, f_in_w = weight.shape
    assert f_in == 2 and f_in_w == 2 and f_out == 2

    # Lane tile: multiple of 128, capped so each buffer stays tiny even on v7x.
    tn = min(max_lane_tile, _round_up(n, 128))
    n_pad = _round_up(n, tn)

    # Glue-level layout plumbing: batch onto lanes, pad to a whole number of tiles.
    zt = z.T  # (2, N)
    if n_pad != n:
        zt = jnp.pad(zt, ((0, 0), (0, n_pad - n)))

    grid = (n_pad // tn,)

    out_t = pl.pallas_call(
        _odef_kernel,
        out_shape=jax.ShapeDtypeStruct((f_out, n_pad), z.dtype),
        grid_spec=pltpu.PrefetchScalarGridSpec(
            num_scalar_prefetch=0,
            grid=grid,
            in_specs=[
                # 2x2 weight: scalars in SMEM, no VMEM tile / DMA double-buffer.
                pl.BlockSpec(memory_space=pltpu.MemorySpace.SMEM),
                # Lane-dense state tiles: (2 features, TN batch lanes).
                pl.BlockSpec((f_in, tn), lambda i: (0, i)),
            ],
            out_specs=pl.BlockSpec((f_out, tn), lambda i: (0, i)),
        ),
        compiler_params=pltpu.CompilerParams(
            # Batch tiles are independent -> shard across TCs on v7x megacore.
            dimension_semantics=("parallel",),
            vmem_limit_bytes=32 * 1024 * 1024,
        ),
    )(weight, zt)

    return out_t[:, :n].T


if __name__ == "__main__":
    key = jax.random.PRNGKey(0)
    k_w, k_z1, k_z2 = jax.random.split(key, 3)

    # Deterministic parameter init matching nn.Linear(2, 2, bias=False) shape:
    # weight (out_features=2, in_features=2), uniform(-1/sqrt(fan_in), 1/sqrt(fan_in)).
    fan_in = 2
    bound = 1.0 / jnp.sqrt(jnp.float32(fan_in))
    weight = jax.random.uniform(
        k_w, (2, 2), dtype=jnp.float32, minval=-bound, maxval=bound
    )

    t = jnp.float32(0.0)

    # Small batch of states z: (N, 2); t is a scalar (unused by the forward).
    N = 8
    z = jax.random.normal(k_z1, (N, 2), dtype=jnp.float32)
    out = jax.block_until_ready(odef_forward(t, z, weight))
    ref = z @ weight.T
    assert out.shape == (N, 2)
    assert jnp.allclose(out, ref, atol=1e-5, rtol=1e-5)

    # Also exercise the padded / non-multiple-of-tile path.
    N2 = 300
    z2 = jax.random.normal(k_z2, (N2, 2), dtype=jnp.float32)
    out2 = jax.block_until_ready(odef_forward(t, z2, weight))
    ref2 = z2 @ weight.T
    assert out2.shape == (N2, 2)
    assert jnp.allclose(out2, ref2, atol=1e-5, rtol=1e-5)

    print("KERNEL_OK")
</pallas_src>

<mosaic_0001>
module attributes {stable_mosaic.version = 11 : i64} {
  func.func @_odef_kernel(%arg0: i32, %arg1: memref<2x2xf32, #tpu.memory_space<smem>>, %arg2: memref<2x128xf32, #tpu.memory_space<vmem>>, %arg3: memref<2x128xf32, #tpu.memory_space<vmem>>) attributes {dimension_semantics = [#tpu.dimension_semantics<parallel>], iteration_bounds = array<i64: 1>, scalar_prefetch = 0 : i64, scratch_operands = 0 : i64, tpu.core_type = #tpu.core_type<tc>, window_params = [{transform_indices = @transform_0, window_bounds = array<i64: 2, 2>}, {transform_indices = @transform_1, window_bounds = array<i64: 2, 128>}, {transform_indices = @transform_2, window_bounds = array<i64: 2, 128>}]} {
    %c0 = arith.constant 0 : index
    %c0_0 = arith.constant 0 : index
    %0 = vector.load %arg2[%c0, %c0_0] : memref<2x128xf32, #tpu.memory_space<vmem>>, vector<2x128xf32>
    %1 = vector.extract_strided_slice %0 {offsets = [0, 0], sizes = [1, 128], strides = [1, 1]} : vector<2x128xf32> to vector<1x128xf32>
    %2 = vector.extract_strided_slice %0 {offsets = [1, 0], sizes = [1, 128], strides = [1, 1]} : vector<2x128xf32> to vector<1x128xf32>
    %c0_1 = arith.constant 0 : index
    %c0_2 = arith.constant 0 : index
    %3 = memref.load %arg1[%c0_1, %c0_2] : memref<2x2xf32, #tpu.memory_space<smem>>
    %4 = vector.broadcast %3 : f32 to vector<1x128xf32>
    %5 = arith.mulf %4, %1 : vector<1x128xf32>
    %c0_3 = arith.constant 0 : index
    %c1 = arith.constant 1 : index
    %6 = memref.load %arg1[%c0_3, %c1] : memref<2x2xf32, #tpu.memory_space<smem>>
    %7 = vector.broadcast %6 : f32 to vector<1x128xf32>
    %8 = arith.mulf %7, %2 : vector<1x128xf32>
    %9 = arith.addf %5, %8 : vector<1x128xf32>
    %c0_4 = arith.constant 0 : index
    %c0_5 = arith.constant 0 : index
    %10 = vector.load %arg3[%c0_4, %c0_5] : memref<2x128xf32, #tpu.memory_space<vmem>>, vector<1x128xf32>
    tpu.vector_store %arg3[%c0_4, %c0_5], %9 {strides = array<i32>} : memref<2x128xf32, #tpu.memory_space<vmem>>, vector<1x128xf32>,
    %c1_6 = arith.constant 1 : index
    %c0_7 = arith.constant 0 : index
    %11 = memref.load %arg1[%c1_6, %c0_7] : memref<2x2xf32, #tpu.memory_space<smem>>
    %12 = vector.broadcast %11 : f32 to vector<1x128xf32>
    %13 = arith.mulf %12, %1 : vector<1x128xf32>
    %c1_8 = arith.constant 1 : index
    %c1_9 = arith.constant 1 : index
    %14 = memref.load %arg1[%c1_8, %c1_9] : memref<2x2xf32, #tpu.memory_space<smem>>
    %15 = vector.broadcast %14 : f32 to vector<1x128xf32>
    %16 = arith.mulf %15, %2 : vector<1x128xf32>
    %17 = arith.addf %13, %16 : vector<1x128xf32>
    %c1_10 = arith.constant 1 : index
    %c0_11 = arith.constant 0 : index
    %18 = vector.load %arg3[%c1_10, %c0_11] : memref<2x128xf32, #tpu.memory_space<vmem>>, vector<1x128xf32>
    tpu.vector_store %arg3[%c1_10, %c0_11], %17 {strides = array<i32>} : memref<2x128xf32, #tpu.memory_space<vmem>>, vector<1x128xf32>,
    return
  }
  func.func @transform_0(%arg0: i32) -> (i32, i32) {
    %c0_i32 = arith.constant 0 : i32
    %c0_i32_0 = arith.constant 0 : i32
    %c0_i32_1 = arith.constant 0 : i32
    return %c0_i32, %c0_i32_0 : i32, i32
  }
  func.func @transform_1(%arg0: i32) -> (i32, i32) {
    %c0_i32 = arith.constant 0 : i32
    %c0_i32_0 = arith.constant 0 : i32
    return %c0_i32, %arg0 : i32, i32
  }
  func.func @transform_2(%arg0: i32) -> (i32, i32) {
    %c0_i32 = arith.constant 0 : i32
    %c0_i32_0 = arith.constant 0 : i32
    return %c0_i32, %arg0 : i32, i32
  }
}

</mosaic_0001>

<llo_original>
// kernel: tpu_custom_call.1
$region0: #{tpu_custom_call.1}
  #allocation0 [shape = 'u32[]', space=smem, size = 0x4, offset = 0x4, fixed_abs, tag = 'smem constant byte address 0x4 - core index']
  #allocation1 [shape = 'u32[72,128]{1,0:T(1,128)}', space=vmem, size = 0x9000, scoped, tag = 'internal scratch']
  %s0 = inlined_call_operand.hbm [shape: f32[2,2], index: 0, kind: input, shape index: {}]
  %s1 = inlined_call_operand.hbm [shape: f32[2,128], index: 1, kind: input, shape index: {}]
  %s2 = inlined_call_operand.hbm [shape: f32[2,128], index: 2, kind: output, shape index: {}]
  %s3 = sld [smem:[#allocation0]]
  $region26: #{tpu_custom_call.1} parent=0
    _
  %s5 = ssub.s32 1, %s3
  %s6 = scalar_select 0, %s5, %s3
  $region1: #{tpu_custom_call.1} parent=0
    #allocation2 [shape = 'u8[1024]{0}', space=smem, size = 0x400, scoped, tag = 'input window, operand 0, single buffered']
    #allocation3 [shape = 's32[1]{0}', space=sflag, size = 0x4, scoped, tag = 'scoped memory for tpu_custom_call.1']
    #allocation4 [shape = 's32[1]{0}', space=sflag, size = 0x4, scoped, tag = 'scoped memory for tpu_custom_call.1']
    #allocation5 [shape = 's32[1]{0}', space=sflag, size = 0x4, scoped, tag = 'scoped memory for tpu_custom_call.1']
    #allocation6 [shape = 'u8[1024]{0}', space=vmem, size = 0x400, scoped, tag = 'input window, operand 1, single buffered']
    #allocation7 [shape = 'u8[1024]{0}', space=vmem, size = 0x400, scoped, tag = 'output window, operand 0, single buffered']
    %7 = vsyncpa [#allocation5], 0
    %8 = vsyncpa [#allocation3], 0
    %9 = vsyncpa [#allocation4], 0
    // Predicated region
    $region2: #{tpu_custom_call.1} parent=1 // pred_check
      _
    $region3: #{tpu_custom_call.1} parent=1 // pred_check_branch
      %11 = sbr.rel (0) target = $region5
    $region4: #{tpu_custom_call.1} parent=1 // pred_region
      %13 = vsyncadd [#allocation5], 0
      %s15 = sshll.u32 %s0, 4
      %s16 = int_to_ptr.hbm [resolvable:$true] %s15
      %18 = dma.hbm_to_smem %s16, 32, [#allocation2], [#allocation5]
    $region5: #{tpu_custom_call.1} parent=1 // pred_fallthru
      _
    // Predicated region
    $region6: #{tpu_custom_call.1} parent=1 // pred_check
      _
    $region7: #{tpu_custom_call.1} parent=1 // pred_check_branch
      %20 = sbr.rel (0) target = $region9
    $region8: #{tpu_custom_call.1} parent=1 // pred_region
      %22 = vsyncadd [#allocation3], 0
      %s24 = sshll.u32 %s1, 4
      %s25 = int_to_ptr.hbm [resolvable:$true] %s24
      %s26 = sshll.u32 [#allocation6], 4
      %s27 = int_to_ptr.vmem [resolvable:$true] %s26
      %29 = dma.hbm_to_vmem [thread:$0]  %s25, 32, %s27, [#allocation3]
    $region9: #{tpu_custom_call.1} parent=1 // pred_fallthru
      _
    // Predicated region
    $region10: #{tpu_custom_call.1} parent=1 // pred_check
      _
    $region11: #{tpu_custom_call.1} parent=1 // pred_check_branch
      %31 = sbr.rel (0) target = $region13
    $region12: #{tpu_custom_call.1} parent=1 // pred_region
      %33 = dma.done [#allocation5], 32
    $region13: #{tpu_custom_call.1} parent=1 // pred_fallthru
      _
    // Predicated region
    $region14: #{tpu_custom_call.1} parent=1 // pred_check
      _
    $region15: #{tpu_custom_call.1} parent=1 // pred_check_branch
      %35 = sbr.rel (0) target = $region17
    $region16: #{tpu_custom_call.1} parent=1 // pred_region
      %37 = dma.done [#allocation3], 32
    $region17: #{tpu_custom_call.1} parent=1 // pred_fallthru
      _
    %38 = sfence
    %v39 = vld [vmem:[#allocation6] sm:$0x3]
    %s40 = sld [smem:[#allocation2]]
    %v41 = vstv %s40
    %v42 = vmul.f32 %v41, %v39
    %s43 = sld [smem:[#allocation2 + $0x1]]
    %v44 = vstv %s43
    %v45 = vmul.f32 %v44, %v39
    %v47 = vrot.slane %v45, 1
    %v49 = vadd.f32 %v42, %v47
    %50 = vst [vmem:[#allocation7] sm:$0x1] %v49
    %s51 = sld [smem:[#allocation2 + $0x80]]
    %v52 = vstv %s51
    %v53 = vmul.f32 %v52, %v39
    %s54 = sld [smem:[#allocation2 + $0x81]]
    %v55 = vstv %s54
    %v56 = vmul.f32 %v55, %v39
    %v58 = vrot.slane %v56, 1
    %v60 = vadd.f32 %v53, %v58
    %61 = vst [vmem:[#allocation7 + $0x1] sm:$0x1] %v60
    // Predicated region
    $region18: #{tpu_custom_call.1} parent=1 // pred_check
      _
    $region19: #{tpu_custom_call.1} parent=1 // pred_check_branch
      %63 = sbr.rel (0) target = $region21
    $region20: #{tpu_custom_call.1} parent=1 // pred_region
      %65 = vsyncadd [#allocation4], 0
      %s67 = sshll.u32 [#allocation7], 4
      %s68 = int_to_ptr.vmem [resolvable:$true] %s67
      %s69 = sshll.u32 %s2, 4
      %s70 = int_to_ptr.hbm [resolvable:$true] %s69
      %72 = dma.vmem_to_hbm [thread:$0]  %s68, 32, %s70, [#allocation4]
    $region21: #{tpu_custom_call.1} parent=1 // pred_fallthru
      _
    // Predicated region
    $region22: #{tpu_custom_call.1} parent=1 // pred_check
      _
    $region23: #{tpu_custom_call.1} parent=1 // pred_check_branch
      %74 = sbr.rel (0) target = $region25
    $region24: #{tpu_custom_call.1} parent=1 // pred_region
      %76 = dma.done [#allocation4], 32
    $region25: #{tpu_custom_call.1} parent=1 // pred_fallthru
      _
    %77 = vsyncpa [#allocation3], 1
    %78 = vsyncpa [#allocation4], 1
    %79 = vsyncpa [#allocation5], 1

</llo_original>
